<compile_context>
chip_gen: v5e
topology: v5e:2x2
jax: 0.10.0
libtpu: 0.0.40
codegen_flags: <defaults>
</compile_context>

<pallas_src>
import functools

import jax
import jax.numpy as jnp
from jax.experimental import pallas as pl
from jax.experimental.pallas import tpu as pltpu

EPS = 1e-5
LANES = 128
BF16_SUBLANES = 16  # native bf16 sublane tile height


def _round_up(n, m):
    return (n + m - 1) // m * m


# ----------------------------------------------------------------------------
# Kernel: fused 4-layer MLP, BN already folded, widths padded to 128 lanes.
# Matmuls accumulate in f32; bias+ReLU in f32; bf16 only for MXU inputs and
# the final (lane-dense) output store.
# ----------------------------------------------------------------------------
def _mlp_kernel(x_ref, w1_ref, w2_ref, w3_ref, w4_ref, b_ref, o_ref):
    h = jnp.dot(x_ref[...], w1_ref[...], preferred_element_type=jnp.float32)
    h = jnp.maximum(h + b_ref[0:1, :], 0.0).astype(jnp.bfloat16)

    h = jnp.dot(h, w2_ref[...], preferred_element_type=jnp.float32)
    h = jnp.maximum(h + b_ref[1:2, :], 0.0).astype(jnp.bfloat16)

    h = jnp.dot(h, w3_ref[...], preferred_element_type=jnp.float32)
    h = jnp.maximum(h + b_ref[2:3, :], 0.0).astype(jnp.bfloat16)

    h = jnp.dot(h, w4_ref[...], preferred_element_type=jnp.float32)
    o_ref[...] = (h + b_ref[3:4, :]).astype(jnp.bfloat16)


# ----------------------------------------------------------------------------
# One-time parameter preparation (hoisted out of the per-call path).
# ----------------------------------------------------------------------------
def fold_bn_params(params):
    """Fold eval-mode BatchNorm into the preceding Linear.

    Returns list of (W_folded (in,out) f32, b_folded (out,) f32), one per layer.
    """
    folded = []
    for i in range(1, 5):
        w = params[f"w{i}"]
        b = params[f"b{i}"].reshape(-1)
        if i < 4:  # BN after the first three linears only
            scale = params[f"g{i}"].reshape(-1) * jax.lax.rsqrt(
                params[f"v{i}"].reshape(-1) + EPS)
            w = w * scale[None, :]
            b = (b - params[f"m{i}"].reshape(-1)) * scale + params[f"be{i}"].reshape(-1)
        folded.append((w, b))
    return folded


def prepare_net_params(params, n_feature):
    """Fold BN, zero-pad weights to (.., 128) bf16 tiles (first K dim padded to
    a multiple of 16 for bf16 sublane packing), pack the 4 biases into a single
    (4, 128) f32 array.  Call ONCE and cache the result."""
    folded = fold_bn_params(params)
    n_output = folded[-1][0].shape[1]
    assert n_output <= LANES, "kernel assumes n_output <= 128"

    f_pad = _round_up(n_feature, BF16_SUBLANES)
    w_padded = []
    b_rows = []
    in_dim = f_pad
    for (w, b) in folded:
        din, dout = w.shape
        wp = jnp.zeros((in_dim, LANES), jnp.float32).at[:din, :dout].set(w)
        w_padded.append(wp.astype(jnp.bfloat16))
        b_rows.append(jnp.zeros((LANES,), jnp.float32).at[:dout].set(b))
        in_dim = LANES
    bias_packed = jnp.stack(b_rows, axis=0)  # (4, 128) f32
    return tuple(w_padded), bias_packed, n_output


# ----------------------------------------------------------------------------
# Jitted forward pass.  Takes pre-packed params; only x changes per call.
# ----------------------------------------------------------------------------
@functools.partial(jax.jit, static_argnames=("n_output", "block_batch"))
def net_forward(x, w1, w2, w3, w4, bias_packed, *, n_output, block_batch=1024):
    """x: (batch, n_feature) float32 -> (batch, n_output) float32."""
    b, n_feature = x.shape
    f_pad = w1.shape[0]

    # Batch tile: multiple of 16 (bf16 sublane packing); keep >=2 grid steps
    # whenever the batch allows (v7x: 2 TensorCores + per-core pipelining).
    b16 = _round_up(b, BF16_SUBLANES)
    tb = min(_round_up(block_batch, BF16_SUBLANES), b16)
    if b16 >= 2 * BF16_SUBLANES and b16 // tb < 2:
        tb = _round_up((b16 + 1) // 2, BF16_SUBLANES)
    b_pad = _round_up(b, tb)

    # Cast to bf16 first, then zero-pad (halves the streamed HBM bytes).
    x_p = jnp.zeros((b_pad, f_pad), jnp.bfloat16)
    x_p = x_p.at[:b, :n_feature].set(x.astype(jnp.bfloat16))

    const = lambda i: (0, 0)
    out = pl.pallas_call(
        _mlp_kernel,
        out_shape=jax.ShapeDtypeStruct((b_pad, LANES), jnp.bfloat16),
        grid=(b_pad // tb,),
        in_specs=[
            pl.BlockSpec((tb, f_pad), lambda i: (i, 0)),     # x: streamed per tile
            pl.BlockSpec((f_pad, LANES), const),             # w1: VMEM-resident
            pl.BlockSpec((LANES, LANES), const),             # w2
            pl.BlockSpec((LANES, LANES), const),             # w3
            pl.BlockSpec((LANES, LANES), const),             # w4
            pl.BlockSpec((4, LANES), const),                 # packed biases
        ],
        out_specs=pl.BlockSpec((tb, LANES), lambda i: (i, 0)),
        compiler_params=pltpu.CompilerParams(
            dimension_semantics=("parallel",),
            vmem_limit_bytes=32 * 1024 * 1024),
    )(x_p, w1, w2, w3, w4, bias_packed)

    return out[:b, :n_output].astype(jnp.float32)


# ----------------------------------------------------------------------------
# Deterministic parameter init mirroring the PyTorch module's shapes.
# Linear weights stored pre-transposed (in, out); BN uses nontrivial running
# stats so the BN path is actually exercised.
# ----------------------------------------------------------------------------
def init_params(key, n_feature, n_output):
    dims = [n_feature, 18, 10, 5, n_output]
    params = {}
    keys = jax.random.split(key, 8)
    for i in range(4):
        din, dout = dims[i], dims[i + 1]
        bound = 1.0 / jnp.sqrt(jnp.float32(din))
        params[f"w{i+1}"] = jax.random.uniform(
            keys[2 * i], (din, dout), jnp.float32, -bound, bound)
        params[f"b{i+1}"] = jax.random.uniform(
            keys[2 * i + 1], (1, dout), jnp.float32, -bound, bound)
        if i < 3:
            params[f"g{i+1}"] = jnp.ones((1, dout), jnp.float32)
            params[f"be{i+1}"] = jnp.zeros((1, dout), jnp.float32)
            params[f"m{i+1}"] = 0.01 * jnp.arange(dout, dtype=jnp.float32).reshape(1, dout)
            params[f"v{i+1}"] = (jnp.ones((1, dout), jnp.float32)
                                 + 0.1 * jnp.arange(dout, dtype=jnp.float32).reshape(1, dout))
    return params


# ----------------------------------------------------------------------------
# References for correctness checks.
# ----------------------------------------------------------------------------
def _reference_matched(x, folded):
    """Pure-JAX reference matching the kernel's mixed precision (bf16 matmul
    inputs, f32 accumulation / elementwise, bf16 output store)."""
    bf = lambda a: a.astype(jnp.bfloat16).astype(jnp.float32)
    h = bf(x)
    for i, (w, b) in enumerate(folded):
        h = jnp.dot(h, bf(w), precision=jax.lax.Precision.HIGHEST) + b
        if i < 3:
            h = bf(jnp.maximum(h, 0.0))
    return bf(h)


def _reference_f32(x, p):
    """Eval-mode forward of the original module, all f32 (unfolded BN)."""
    h = x
    for i in range(1, 4):
        h = h @ p[f"w{i}"] + p[f"b{i}"]
        h = (h - p[f"m{i}"]) * (p[f"g{i}"] * jax.lax.rsqrt(p[f"v{i}"] + EPS)) + p[f"be{i}"]
        h = jnp.maximum(h, 0.0)
    return h @ p["w4"] + p["b4"]


if __name__ == "__main__":
    batch, n_feature, n_output = 256, 8, 3

    key = jax.random.PRNGKey(0)
    kx, kp = jax.random.split(key)
    x = jax.random.normal(kx, (batch, n_feature), jnp.float32)
    params = init_params(kp, n_feature, n_output)

    # One-time parameter prep (hoisted out of the per-call path).
    (w1, w2, w3, w4), bias_packed, n_out = prepare_net_params(params, n_feature)

    out = net_forward(x, w1, w2, w3, w4, bias_packed, n_output=n_out)
    out = jax.block_until_ready(out)
    assert out.shape == (batch, n_output)

    # Second call exercises the cached jit path (no re-prep, no re-trace).
    out2 = jax.block_until_ready(
        net_forward(x, w1, w2, w3, w4, bias_packed, n_output=n_out))
    assert jnp.array_equal(out, out2)

    ref_matched = _reference_matched(x, fold_bn_params(params))
    ref_f32 = _reference_f32(x, params)
    assert jnp.allclose(out, ref_matched, atol=1e-2, rtol=1e-2), \
        "mismatch vs matched-precision reference"
    assert jnp.allclose(out, ref_f32, atol=1e-1, rtol=1e-1), \
        "mismatch vs f32 eval-mode reference"

    print("KERNEL_OK")
</pallas_src>

<mosaic_0001>
module attributes {stable_mosaic.version = 11 : i64} {
  func.func @_mlp_kernel(%arg0: i32, %arg1: memref<128x16xbf16, #tpu.memory_space<vmem>>, %arg2: memref<16x128xbf16, #tpu.memory_space<vmem>>, %arg3: memref<128x128xbf16, #tpu.memory_space<vmem>>, %arg4: memref<128x128xbf16, #tpu.memory_space<vmem>>, %arg5: memref<128x128xbf16, #tpu.memory_space<vmem>>, %arg6: memref<4x128xf32, #tpu.memory_space<vmem>>, %arg7: memref<128x128xbf16, #tpu.memory_space<vmem>>) attributes {dimension_semantics = [#tpu.dimension_semantics<parallel>], iteration_bounds = array<i64: 2>, scalar_prefetch = 0 : i64, scratch_operands = 0 : i64, tpu.core_type = #tpu.core_type<tc>, window_params = [{transform_indices = @transform_0, window_bounds = array<i64: 128, 16>}, {pipeline_mode = #tpu.pipeline_mode<synchronous>, transform_indices = @transform_1, window_bounds = array<i64: 16, 128>}, {pipeline_mode = #tpu.pipeline_mode<synchronous>, transform_indices = @transform_2, window_bounds = array<i64: 128, 128>}, {pipeline_mode = #tpu.pipeline_mode<synchronous>, transform_indices = @transform_3, window_bounds = array<i64: 128, 128>}, {pipeline_mode = #tpu.pipeline_mode<synchronous>, transform_indices = @transform_4, window_bounds = array<i64: 128, 128>}, {pipeline_mode = #tpu.pipeline_mode<synchronous>, transform_indices = @transform_5, window_bounds = array<i64: 4, 128>}, {transform_indices = @transform_6, window_bounds = array<i64: 128, 128>}]} {
    %c0 = arith.constant 0 : index
    %c0_0 = arith.constant 0 : index
    %0 = vector.load %arg1[%c0, %c0_0] : memref<128x16xbf16, #tpu.memory_space<vmem>>, vector<128x16xbf16>
    %c0_1 = arith.constant 0 : index
    %c0_2 = arith.constant 0 : index
    %1 = vector.load %arg2[%c0_1, %c0_2] : memref<16x128xbf16, #tpu.memory_space<vmem>>, vector<16x128xbf16>
    %cst = arith.constant dense<0.000000e+00> : vector<128x128xf32>
    %2 = tpu.matmul %0, %1, %cst {dimension_numbers = #tpu.dot_dimension_numbers<[1], [0], [0], [1], [0, 0, 1, 1], [], []>} : vector<128x16xbf16>, vector<16x128xbf16>, vector<128x128xf32> -> vector<128x128xf32>
    %c0_3 = arith.constant 0 : index
    %c0_4 = arith.constant 0 : index
    %3 = vector.load %arg6[%c0_3, %c0_4] : memref<4x128xf32, #tpu.memory_space<vmem>>, vector<1x128xf32>
    %4 = vector.broadcast %3 : vector<1x128xf32> to vector<128x128xf32>
    %5 = arith.addf %2, %4 : vector<128x128xf32>
    %cst_5 = arith.constant 0.000000e+00 : f32
    %6 = vector.broadcast %cst_5 : f32 to vector<128x128xf32>
    %7 = arith.maximumf %5, %6 : vector<128x128xf32>
    %8 = arith.truncf %7 : vector<128x128xf32> to vector<128x128xbf16>
    %c0_6 = arith.constant 0 : index
    %c0_7 = arith.constant 0 : index
    %9 = vector.load %arg3[%c0_6, %c0_7] : memref<128x128xbf16, #tpu.memory_space<vmem>>, vector<128x128xbf16>
    %cst_8 = arith.constant dense<0.000000e+00> : vector<128x128xf32>
    %10 = tpu.matmul %8, %9, %cst_8 {dimension_numbers = #tpu.dot_dimension_numbers<[1], [0], [0], [1], [0, 0, 1, 1], [], []>} : vector<128x128xbf16>, vector<128x128xbf16>, vector<128x128xf32> -> vector<128x128xf32>
    %c1 = arith.constant 1 : index
    %c0_9 = arith.constant 0 : index
    %11 = vector.load %arg6[%c1, %c0_9] : memref<4x128xf32, #tpu.memory_space<vmem>>, vector<1x128xf32>
    %12 = vector.broadcast %11 : vector<1x128xf32> to vector<128x128xf32>
    %13 = arith.addf %10, %12 : vector<128x128xf32>
    %cst_10 = arith.constant 0.000000e+00 : f32
    %14 = vector.broadcast %cst_10 : f32 to vector<128x128xf32>
    %15 = arith.maximumf %13, %14 : vector<128x128xf32>
    %16 = arith.truncf %15 : vector<128x128xf32> to vector<128x128xbf16>
    %c0_11 = arith.constant 0 : index
    %c0_12 = arith.constant 0 : index
    %17 = vector.load %arg4[%c0_11, %c0_12] : memref<128x128xbf16, #tpu.memory_space<vmem>>, vector<128x128xbf16>
    %cst_13 = arith.constant dense<0.000000e+00> : vector<128x128xf32>
    %18 = tpu.matmul %16, %17, %cst_13 {dimension_numbers = #tpu.dot_dimension_numbers<[1], [0], [0], [1], [0, 0, 1, 1], [], []>} : vector<128x128xbf16>, vector<128x128xbf16>, vector<128x128xf32> -> vector<128x128xf32>
    %c2 = arith.constant 2 : index
    %c0_14 = arith.constant 0 : index
    %19 = vector.load %arg6[%c2, %c0_14] : memref<4x128xf32, #tpu.memory_space<vmem>>, vector<1x128xf32>
    %20 = vector.broadcast %19 : vector<1x128xf32> to vector<128x128xf32>
    %21 = arith.addf %18, %20 : vector<128x128xf32>
    %cst_15 = arith.constant 0.000000e+00 : f32
    %22 = vector.broadcast %cst_15 : f32 to vector<128x128xf32>
    %23 = arith.maximumf %21, %22 : vector<128x128xf32>
    %24 = arith.truncf %23 : vector<128x128xf32> to vector<128x128xbf16>
    %c0_16 = arith.constant 0 : index
    %c0_17 = arith.constant 0 : index
    %25 = vector.load %arg5[%c0_16, %c0_17] : memref<128x128xbf16, #tpu.memory_space<vmem>>, vector<128x128xbf16>
    %cst_18 = arith.constant dense<0.000000e+00> : vector<128x128xf32>
    %26 = tpu.matmul %24, %25, %cst_18 {dimension_numbers = #tpu.dot_dimension_numbers<[1], [0], [0], [1], [0, 0, 1, 1], [], []>} : vector<128x128xbf16>, vector<128x128xbf16>, vector<128x128xf32> -> vector<128x128xf32>
    %c3 = arith.constant 3 : index
    %c0_19 = arith.constant 0 : index
    %27 = vector.load %arg6[%c3, %c0_19] : memref<4x128xf32, #tpu.memory_space<vmem>>, vector<1x128xf32>
    %28 = vector.broadcast %27 : vector<1x128xf32> to vector<128x128xf32>
    %29 = arith.addf %26, %28 : vector<128x128xf32>
    %30 = arith.truncf %29 : vector<128x128xf32> to vector<128x128xbf16>
    %c0_20 = arith.constant 0 : index
    %c0_21 = arith.constant 0 : index
    %31 = vector.load %arg7[%c0_20, %c0_21] : memref<128x128xbf16, #tpu.memory_space<vmem>>, vector<128x128xbf16>
    tpu.vector_store %arg7[%c0_20, %c0_21], %30 {strides = array<i32>} : memref<128x128xbf16, #tpu.memory_space<vmem>>, vector<128x128xbf16>,
    return
  }
  func.func @transform_0(%arg0: i32) -> (i32, i32) {
    %c0_i32 = arith.constant 0 : i32
    %c0_i32_0 = arith.constant 0 : i32
    return %arg0, %c0_i32 : i32, i32
  }
  func.func @transform_1(%arg0: i32) -> (i32, i32) {
    %c0_i32 = arith.constant 0 : i32
    %c0_i32_0 = arith.constant 0 : i32
    %c0_i32_1 = arith.constant 0 : i32
    return %c0_i32, %c0_i32_0 : i32, i32
  }
  func.func @transform_2(%arg0: i32) -> (i32, i32) {
    %c0_i32 = arith.constant 0 : i32
    %c0_i32_0 = arith.constant 0 : i32
    %c0_i32_1 = arith.constant 0 : i32
    return %c0_i32, %c0_i32_0 : i32, i32
  }
  func.func @transform_3(%arg0: i32) -> (i32, i32) {
    %c0_i32 = arith.constant 0 : i32
    %c0_i32_0 = arith.constant 0 : i32
    %c0_i32_1 = arith.constant 0 : i32
    return %c0_i32, %c0_i32_0 : i32, i32
  }
  func.func @transform_4(%arg0: i32) -> (i32, i32) {
    %c0_i32 = arith.constant 0 : i32
    %c0_i32_0 = arith.constant 0 : i32
    %c0_i32_1 = arith.constant 0 : i32
    return %c0_i32, %c0_i32_0 : i32, i32
  }
  func.func @transform_5(%arg0: i32) -> (i32, i32) {
    %c0_i32 = arith.constant 0 : i32
    %c0_i32_0 = arith.constant 0 : i32
    %c0_i32_1 = arith.constant 0 : i32
    return %c0_i32, %c0_i32_0 : i32, i32
  }
  func.func @transform_6(%arg0: i32) -> (i32, i32) {
    %c0_i32 = arith.constant 0 : i32
    %c0_i32_0 = arith.constant 0 : i32
    return %arg0, %c0_i32 : i32, i32
  }
}

</mosaic_0001>

<llo_original>
// kernel: net_forward.1
$region0: #{net_forward.1}
  #allocation0 [shape = 'u32[]', space=smem, size = 0x4, offset = 0x4, fixed_abs, tag = 'smem constant byte address 0x4 - core index']
  #allocation1 [shape = 'u32[72,128]{1,0:T(1,128)}', space=vmem, size = 0x9000, scoped, tag = 'internal scratch']
  %s0 = inlined_call_operand.vmem [shape: bf16[256,16], index: 0, kind: input, shape index: {}]
  %s1 = inlined_call_operand.vmem [shape: bf16[16,128], index: 1, kind: input, shape index: {}]
  %s2 = inlined_call_operand.vmem [shape: bf16[128,128], index: 2, kind: input, shape index: {}]
  %s3 = inlined_call_operand.vmem [shape: bf16[128,128], index: 3, kind: input, shape index: {}]
  %s4 = inlined_call_operand.vmem [shape: bf16[128,128], index: 4, kind: input, shape index: {}]
  %s5 = inlined_call_operand.vmem [shape: f32[4,128], index: 5, kind: input, shape index: {}]
  %s6 = inlined_call_operand.vmem [shape: bf16[256,128], index: 6, kind: output, shape index: {}]
  %s7 = sld [smem:[#allocation0]]
  $region57: #{net_forward.1} parent=0
    _
  %s9 = ssub.s32 1, %s7
  %s10 = scalar_select 0, %s9, %s7
  loop: start=0, step=1, limit=4
  $region2: #{net_forward.1} parent=0 // loop_pre_header
    _
  $region3: #{net_forward.1} parent=0 // loop_header
    %s12 = sphi 0, %s16
    %p13 = scmp.ge.s32.totalorder %s12, 4
    %s22 = sphi 0, %s24
    %s25 = sphi 0, %s22
    %s26 = sphi 0, %s25
    %s42 = sphi 0, %s26
    %s46 = sphi 0, %s46
    %s48 = sphi 0, %s46
    %s49 = sphi 0, %s48
    %s63 = sphi 0, %s49
    %s67 = sphi 0, %s67
    %s69 = sphi 0, %s67
    %s70 = sphi 0, %s69
    %s84 = sphi 0, %s70
    %s88 = sphi 0, %s88
    %s90 = sphi 0, %s88
    %s91 = sphi 0, %s90
    %s105 = sphi 0, %s91
    %s109 = sphi 0, %s109
    %s111 = sphi 0, %s109
    %s112 = sphi 0, %s111
    %s126 = sphi 0, %s112
    %s130 = sphi 0, %s130
    %s132 = sphi 0, %s130
    %s133 = sphi 0, %s132
    %s147 = sphi 0, %s133
    %s153 = sphi 0, %s155
    %s156 = sphi 0, %s153
    %s157 = sphi 0, %s156
    %s173 = sphi 0, %s157
  $region4: #{net_forward.1} parent=0 // loop_header_branch
    %15 = sbr.rel (%p13) target = $region8
  $region5: #{net_forward.1} parent=0 // loop_body
    %s17 = ssub.s32 %s12, 1
    %s18 = ssub.s32 %s12, 2
    %s19 = sadd.s32 %s12, 1
    %s20 = ssub.s32 %s12, %s19
    %p21 = scmp.eq.s32.totalorder %s20, 0
    %s23 = sadd.s32 %s22, 1
    %s24 = scalar_select %p21, %s22, %s23
    %p27 = pneg %p21
    %p28 = scmp.eq.s32.totalorder %s12, 1
    %p29 = por %p27, %p28
    %p30 = scmp.ne.s32.totalorder %s22, %s25
    %p31 = scmp.eq.s32.totalorder %s12, 0
    %p32 = por %p30, %p31
    %p33 = scmp.ne.s32.totalorder %s22, %s25
    %p34 = scmp.eq.s32.totalorder %s17, 1
    %p35 = por %p33, %p34
    %p36 = scmp.ne.s32.totalorder %s25, %s26
    %p37 = scmp.eq.s32.totalorder %s17, 0
    %p38 = por %p36, %p37
    %p39 = scmp.ne.s32.totalorder %s25, %s26
    %p40 = scmp.eq.s32.totalorder %s18, 1
    %p41 = por %p39, %p40
    %p43 = scmp.ne.s32.totalorder %s26, %s42
    %p44 = scmp.eq.s32.totalorder %s18, 0
    %p45 = por %p43, %p44
    %s47 = sadd.s32 %s46, 1
    %p50 = scmp.eq.s32.totalorder %s12, 1
    %p51 = scmp.ne.s32.totalorder %s46, %s48
    %p52 = scmp.eq.s32.totalorder %s12, 0
    %p53 = por %p51, %p52
    %p54 = scmp.ne.s32.totalorder %s46, %s48
    %p55 = scmp.eq.s32.totalorder %s17, 1
    %p56 = por %p54, %p55
    %p57 = scmp.ne.s32.totalorder %s48, %s49
    %p58 = scmp.eq.s32.totalorder %s17, 0
    %p59 = por %p57, %p58
    %p60 = scmp.ne.s32.totalorder %s48, %s49
    %p61 = scmp.eq.s32.totalorder %s18, 1
    %p62 = por %p60, %p61
    %p64 = scmp.ne.s32.totalorder %s49, %s63
    %p65 = scmp.eq.s32.totalorder %s18, 0
    %p66 = por %p64, %p65
    %s68 = sadd.s32 %s67, 1
    %p71 = scmp.eq.s32.totalorder %s12, 1
    %p72 = scmp.ne.s32.totalorder %s67, %s69
    %p73 = scmp.eq.s32.totalorder %s12, 0
    %p74 = por %p72, %p73
    %p75 = scmp.ne.s32.totalorder %s67, %s69
    %p76 = scmp.eq.s32.totalorder %s17, 1
    %p77 = por %p75, %p76
    %p78 = scmp.ne.s32.totalorder %s69, %s70
    %p79 = scmp.eq.s32.totalorder %s17, 0
    %p80 = por %p78, %p79
    %p81 = scmp.ne.s32.totalorder %s69, %s70
    %p82 = scmp.eq.s32.totalorder %s18, 1
    %p83 = por %p81, %p82
    %p85 = scmp.ne.s32.totalorder %s70, %s84
    %p86 = scmp.eq.s32.totalorder %s18, 0
    %p87 = por %p85, %p86
    %s89 = sadd.s32 %s88, 1
    %p92 = scmp.eq.s32.totalorder %s12, 1
    %p93 = scmp.ne.s32.totalorder %s88, %s90
    %p94 = scmp.eq.s32.totalorder %s12, 0
    %p95 = por %p93, %p94
    %p96 = scmp.ne.s32.totalorder %s88, %s90
    %p97 = scmp.eq.s32.totalorder %s17, 1
    %p98 = por %p96, %p97
    %p99 = scmp.ne.s32.totalorder %s90, %s91
    %p100 = scmp.eq.s32.totalorder %s17, 0
    %p101 = por %p99, %p100
    %p102 = scmp.ne.s32.totalorder %s90, %s91
    %p103 = scmp.eq.s32.totalorder %s18, 1
    %p104 = por %p102, %p103
    %p106 = scmp.ne.s32.totalorder %s91, %s105
    %p107 = scmp.eq.s32.totalorder %s18, 0
    %p108 = por %p106, %p107
    %s110 = sadd.s32 %s109, 1
    %p113 = scmp.eq.s32.totalorder %s12, 1
    %p114 = scmp.ne.s32.totalorder %s109, %s111
    %p115 = scmp.eq.s32.totalorder %s12, 0
    %p116 = por %p114, %p115
    %p117 = scmp.ne.s32.totalorder %s109, %s111
    %p118 = scmp.eq.s32.totalorder %s17, 1
    %p119 = por %p117, %p118
    %p120 = scmp.ne.s32.totalorder %s111, %s112
    %p121 = scmp.eq.s32.totalorder %s17, 0
    %p122 = por %p120, %p121
    %p123 = scmp.ne.s32.totalorder %s111, %s112
    %p124 = scmp.eq.s32.totalorder %s18, 1
    %p125 = por %p123, %p124
    %p127 = scmp.ne.s32.totalorder %s112, %s126
    %p128 = scmp.eq.s32.totalorder %s18, 0
    %p129 = por %p127, %p128
    %s131 = sadd.s32 %s130, 1
    %p134 = scmp.eq.s32.totalorder %s12, 1
    %p135 = scmp.ne.s32.totalorder %s130, %s132
    %p136 = scmp.eq.s32.totalorder %s12, 0
    %p137 = por %p135, %p136
    %p138 = scmp.ne.s32.totalorder %s130, %s132
    %p139 = scmp.eq.s32.totalorder %s17, 1
    %p140 = por %p138, %p139
    %p141 = scmp.ne.s32.totalorder %s132, %s133
    %p142 = scmp.eq.s32.totalorder %s17, 0
    %p143 = por %p141, %p142
    %p144 = scmp.ne.s32.totalorder %s132, %s133
    %p145 = scmp.eq.s32.totalorder %s18, 1
    %p146 = por %p144, %p145
    %p148 = scmp.ne.s32.totalorder %s133, %s147
    %p149 = scmp.eq.s32.totalorder %s18, 0
    %p150 = por %p148, %p149
    %s151 = ssub.s32 %s12, %s19
    %p152 = scmp.eq.s32.totalorder %s151, 0
    %s154 = sadd.s32 %s153, 1
    %s155 = scalar_select %p152, %s153, %s154
    %p158 = pneg %p152
    %p159 = scmp.eq.s32.totalorder %s12, 1
    %p160 = por %p158, %p159
    %p161 = scmp.ne.s32.totalorder %s153, %s156
    %p162 = scmp.eq.s32.totalorder %s12, 0
    %p163 = por %p161, %p162
    %p164 = scmp.ne.s32.totalorder %s153, %s156
    %p165 = scmp.eq.s32.totalorder %s17, 1
    %p166 = por %p164, %p165
    %p167 = scmp.ne.s32.totalorder %s156, %s157
    %p168 = scmp.eq.s32.totalorder %s17, 0
    %p169 = por %p167, %p168
    %p170 = scmp.ne.s32.totalorder %s156, %s157
    %p171 = scmp.eq.s32.totalorder %s18, 1
    %p172 = por %p170, %p171
    %p174 = scmp.ne.s32.totalorder %s157, %s173
    %p175 = scmp.eq.s32.totalorder %s18, 0
    %p176 = por %p174, %p175
    %p177 = scmp.le.s32.totalorder 1, %s12
    %p178 = scmp.lt.s32.totalorder %s12, 3
    %p179 = pnand %p177, %p178
    %p180 = pneg %p179
    // Predicated region
    $region9: #{net_forward.1} parent=5 // pred_check
      _
    $region10: #{net_forward.1} parent=5 // pred_check_branch
      %182 = sbr.rel (%p179) target = $region12
    $region11: #{net_forward.1} parent=5 // pred_region
      %s183 = ssub.s32 %s12, 1
      // Predicated region
      $region13: #{net_forward.1} parent=11 // pred_check
        %p184 = pneg %p59
      $region14: #{net_forward.1} parent=11 // pred_check_branch
        %186 = sbr.rel (%p184) target = $region16
      $region15: #{net_forward.1} parent=11 // pred_region
        _
      $region16: #{net_forward.1} parent=11 // pred_fallthru
        _
      // Predicated region
      $region17: #{net_forward.1} parent=11 // pred_check
        %p187 = pneg %p80
      $region18: #{net_forward.1} parent=11 // pred_check_branch
        %189 = sbr.rel (%p187) target = $region20
      $region19: #{net_forward.1} parent=11 // pred_region
        _
      $region20: #{net_forward.1} parent=11 // pred_fallthru
        _
      // Predicated region
      $region21: #{net_forward.1} parent=11 // pred_check
        %p190 = pneg %p101
      $region22: #{net_forward.1} parent=11 // pred_check_branch
        %192 = sbr.rel (%p190) target = $region24
      $region23: #{net_forward.1} parent=11 // pred_region
        _
      $region24: #{net_forward.1} parent=11 // pred_fallthru
        _
      // Predicated region
      $region25: #{net_forward.1} parent=11 // pred_check
        %p193 = pneg %p122
      $region26: #{net_forward.1} parent=11 // pred_check_branch
        %195 = sbr.rel (%p193) target = $region28
      $region27: #{net_forward.1} parent=11 // pred_region
        _
      $region28: #{net_forward.1} parent=11 // pred_fallthru
        _
      // Predicated region
      $region29: #{net_forward.1} parent=11 // pred_check
        %p196 = pneg %p143
      $region30: #{net_forward.1} parent=11 // pred_check_branch
        %198 = sbr.rel (%p196) target = $region32
      $region31: #{net_forward.1} parent=11 // pred_region
        _
      $region32: #{net_forward.1} parent=11 // pred_fallthru
        _
    $region12: #{net_forward.1} parent=5 // pred_fallthru
      _
    %p199 = scmp.lt.s32.totalorder %s12, 2
    // Predicated region
    $region33: #{net_forward.1} parent=5 // pred_check
      %p200 = pneg %p199
    $region34: #{net_forward.1} parent=5 // pred_check_branch
      %202 = sbr.rel (%p200) target = $region36
    $region35: #{net_forward.1} parent=5 // pred_region
      // Predicated region
      $region37: #{net_forward.1} parent=35 // pred_check
        %p203 = pneg %p32
      $region38: #{net_forward.1} parent=35 // pred_check_branch
        %205 = sbr.rel (%p203) target = $region40
      $region39: #{net_forward.1} parent=35 // pred_region
        %s206 = smul.u32 16, %s12
        %p207 = scmp.lt.s32.totalorder %s206, 31
        %s208 = scalar_select %p207, %s206, 31
        %s209 = smul.addr %s208, 4
        %s210 = scalar_lea.vmem %s0, %s209
        %s211 = smul.u32 16, %s12
      $region40: #{net_forward.1} parent=35 // pred_fallthru
        _
    $region36: #{net_forward.1} parent=5 // pred_fallthru
      _
    %p212 = scmp.le.s32.totalorder 1, %s12
    %p213 = scmp.lt.s32.totalorder %s12, 3
    %p214 = pnand %p212, %p213
    %p215 = pneg %p214
    // Predicated region
    $region41: #{net_forward.1} parent=5 // pred_check
      _
    $region42: #{net_forward.1} parent=5 // pred_check_branch
      %217 = sbr.rel (%p214) target = $region44
    $region43: #{net_forward.1} parent=5 // pred_region
      %s218 = ssub.s32 %s12, 1
      %s219 = smul.u32 16, %s17
      %p220 = scmp.lt.s32.totalorder %s219, 31
      %s221 = scalar_select %p220, %s219, 31
      %s222 = smul.addr %s221, 4
      %s223 = scalar_lea.vmem %s0, %s222
      %p224 = pneg %p38
      %p225 = pneg %p35
      %p226 = pneg %p59
      %p227 = pneg %p56
      %p228 = pneg %p80
      %p229 = pneg %p77
      %p230 = pneg %p101
      %p231 = pneg %p98
      %p232 = pneg %p122
      %p233 = pneg %p119
      %p234 = pneg %p143
      %p235 = pneg %p140
      %p236 = pneg %p169
      %p237 = pneg %p166
      %s238 = smul.u32 16, %s17
      %p239 = scmp.lt.s32.totalorder %s238, 31
      %s240 = scalar_select %p239, %s238, 31
      %s241 = smul.addr %s240, 4
      %s242 = scalar_lea.vmem %s6, %s241
      %s243 = smul.u32 16, %s17
      %p244 = scmp.lt.s32.totalorder %s243, 31
      %s245 = scalar_select %p244, %s243, 31
      %s246 = smul.addr %s245, 4
      %s247 = scalar_lea.vmem %s0, %s246
      %s248 = smul.u32 16, %s17
      %s249 = smul.u32 16, %s17
      %p250 = scmp.lt.s32.totalorder %s249, 31
      %s251 = scalar_select %p250, %s249, 31
      %s252 = smul.addr %s251, 4
      %s253 = scalar_lea.vmem %s6, %s252
      %s254 = smul.u32 16, %s17
      %v256 = vld [vmem:[%s247] sm:$0xf]
      %v257 = vld [vmem:[%s247 + $0x4] sm:$0xf]
      %v258 = vld [vmem:[%s247 + $0x8] sm:$0xf]
      %v259 = vld [vmem:[%s247 + $0xc] sm:$0xf]
      %v260 = vld [vmem:[%s247 + $0x10] sm:$0xf]
      %v261 = vld [vmem:[%s247 + $0x14] sm:$0xf]
      %v262 = vld [vmem:[%s247 + $0x18] sm:$0xf]
      %v263 = vld [vmem:[%s247 + $0x1c] sm:$0xf]
      %v264 = vld [vmem:[%s247 + $0x20] sm:$0xf]
      %v265 = vld [vmem:[%s247 + $0x24] sm:$0xf]
      %v266 = vld [vmem:[%s247 + $0x28] sm:$0xf]
      %v267 = vld [vmem:[%s247 + $0x2c] sm:$0xf]
      %v268 = vld [vmem:[%s247 + $0x30] sm:$0xf]
      %v269 = vld [vmem:[%s247 + $0x34] sm:$0xf]
      %v270 = vld [vmem:[%s247 + $0x38] sm:$0xf]
      %v271 = vld [vmem:[%s247 + $0x3c] sm:$0xf]
      %v272 = vld [vmem:[%s1] sm:$0xf]
      %v273 = vld [vmem:[%s1 + $0x4] sm:$0xf]
      %v274 = vld [vmem:[%s5] sm:$0x1]
      %v275 = vperm.slane %v274, 0
      %v292 = vunpack.c.l.b16 %v256
      %v293 = vunpack.c.l.b16 %v257
      %v294 = vunpack.c.l.b16 %v258
      %v295 = vunpack.c.l.b16 %v259
      %v296 = vunpack.c.l.b16 %v260
      %v297 = vunpack.c.l.b16 %v261
      %v298 = vunpack.c.l.b16 %v262
      %v299 = vunpack.c.l.b16 %v263
      %v300 = vunpack.c.l.b16 %v264
      %v301 = vunpack.c.l.b16 %v265
      %v302 = vunpack.c.l.b16 %v266
      %v303 = vunpack.c.l.b16 %v267
      %v304 = vunpack.c.l.b16 %v268
      %v305 = vunpack.c.l.b16 %v269
      %v306 = vunpack.c.l.b16 %v270
      %v307 = vunpack.c.l.b16 %v271
      %v308 = vpack.c.b16 %v293, %v292
      %v309 = vpack.c.b16 %v295, %v294
      %v310 = vpack.c.b16 %v297, %v296
      %v311 = vpack.c.b16 %v299, %v298
      %v312 = vpack.c.b16 %v301, %v300
      %v313 = vpack.c.b16 %v303, %v302
      %v314 = vpack.c.b16 %v305, %v304
      %v315 = vpack.c.b16 %v307, %v306
      %v318 = vunpack.c.l.b16 %v272
      %v319 = vunpack.c.l.b16 %v273
      %v320 = vpack.c.b16 %v319, %v318
      %vm322 = vcmask 130048
      %v324 = vsel %vm322, %v308, 0
      %v327 = vsel %vm322, %v309, 0
      %v330 = vsel %vm322, %v310, 0
      %v333 = vsel %vm322, %v311, 0
      %v336 = vsel %vm322, %v312, 0
      %v339 = vsel %vm322, %v313, 0
      %v342 = vsel %vm322, %v314, 0
      %v345 = vsel %vm322, %v315, 0
      %347 = vmatpush.bf16.msra.mxu0 0
      %348 = vmatpush.bf16.msra.mxu0 0
      %349 = vmatpush.bf16.msra.mxu0 0
      %350 = vmatpush.bf16.msra.mxu0 0
      %351 = vmatpush.bf16.msra.mxu0 0
      %352 = vmatpush.bf16.msra.mxu0 0
      %353 = vmatpush.bf16.msra.mxu0 0
      %354 = vmatpush.bf16.msra.mxu0 %v320
      %355 = vmatmul.bf16.gmra.mxu0 %v324
      %v356 = vpop.f32.mrf.mxu0
      %v357 = vadd.f32 %v275, %v356
      %v358 = vpop.f32.mrf.mxu0
      %v359 = vadd.f32 %v275, %v358
      %360 = vmatmul.bf16.gmra.mxu0 %v327
      %v361 = vpop.f32.mrf.mxu0
      %v362 = vadd.f32 %v275, %v361
      %v363 = vpop.f32.mrf.mxu0
      %v364 = vadd.f32 %v275, %v363
      %365 = vmatmul.bf16.gmra.mxu0 %v330
      %v366 = vpop.f32.mrf.mxu0
      %v367 = vadd.f32 %v275, %v366
      %v368 = vpop.f32.mrf.mxu0
      %v369 = vadd.f32 %v275, %v368
      %370 = vmatmul.bf16.gmra.mxu0 %v333
      %v371 = vpop.f32.mrf.mxu0
      %v372 = vadd.f32 %v275, %v371
      %v373 = vpop.f32.mrf.mxu0
      %v374 = vadd.f32 %v275, %v373
      %375 = vmatmul.bf16.gmra.mxu0 %v336
      %v376 = vpop.f32.mrf.mxu0
      %v377 = vadd.f32 %v275, %v376
      %v378 = vpop.f32.mrf.mxu0
      %v379 = vadd.f32 %v275, %v378
      %380 = vmatmul.bf16.gmra.mxu0 %v339
      %v381 = vpop.f32.mrf.mxu0
      %v382 = vadd.f32 %v275, %v381
      %v383 = vpop.f32.mrf.mxu0
      %v384 = vadd.f32 %v275, %v383
      %385 = vmatmul.bf16.gmra.mxu0 %v342
      %v386 = vpop.f32.mrf.mxu0
      %v387 = vadd.f32 %v275, %v386
      %v388 = vpop.f32.mrf.mxu0
      %v389 = vadd.f32 %v275, %v388
      %390 = vmatmul.bf16.gmra.mxu0 %v345
      %v391 = vpop.f32.mrf.mxu0
      %v392 = vadd.f32 %v275, %v391
      %v393 = vpop.f32.mrf.mxu0
      %v394 = vadd.f32 %v275, %v393
      %395 = vdwg.mxu0
      %v396 = vmax.f32 %v357, 0.0
      %v397 = vmax.f32 %v359, 0.0
      %v398 = vmax.f32 %v362, 0.0
      %v399 = vmax.f32 %v364, 0.0
      %v400 = vmax.f32 %v367, 0.0
      %v401 = vmax.f32 %v369, 0.0
      %v402 = vmax.f32 %v372, 0.0
      %v403 = vmax.f32 %v374, 0.0
      %v404 = vmax.f32 %v377, 0.0
      %v405 = vmax.f32 %v379, 0.0
      %v406 = vmax.f32 %v382, 0.0
      %v407 = vmax.f32 %v384, 0.0
      %v408 = vmax.f32 %v387, 0.0
      %v409 = vmax.f32 %v389, 0.0
      %v410 = vmax.f32 %v392, 0.0
      %v411 = vmax.f32 %v394, 0.0
      %v412 = vpack.c.bf16 %v397, %v396
      %v413 = vpack.c.bf16 %v399, %v398
      %v414 = vpack.c.bf16 %v401, %v400
      %v415 = vpack.c.bf16 %v403, %v402
      %v416 = vpack.c.bf16 %v405, %v404
      %v417 = vpack.c.bf16 %v407, %v406
      %v418 = vpack.c.bf16 %v409, %v408
      %v419 = vpack.c.bf16 %v411, %v410
      %v420 = vld [vmem:[%s2] sm:$0xf]
      %v421 = vld [vmem:[%s2 + $0x4] sm:$0xf]
      %v422 = vld [vmem:[%s2 + $0x8] sm:$0xf]
      %v423 = vld [vmem:[%s2 + $0xc] sm:$0xf]
      %v424 = vld [vmem:[%s2 + $0x10] sm:$0xf]
      %v425 = vld [vmem:[%s2 + $0x14] sm:$0xf]
      %v426 = vld [vmem:[%s2 + $0x18] sm:$0xf]
      %v427 = vld [vmem:[%s2 + $0x1c] sm:$0xf]
      %v428 = vld [vmem:[%s2 + $0x20] sm:$0xf]
      %v429 = vld [vmem:[%s2 + $0x24] sm:$0xf]
      %v430 = vld [vmem:[%s2 + $0x28] sm:$0xf]
      %v431 = vld [vmem:[%s2 + $0x2c] sm:$0xf]
      %v432 = vld [vmem:[%s2 + $0x30] sm:$0xf]
      %v433 = vld [vmem:[%s2 + $0x34] sm:$0xf]
      %v434 = vld [vmem:[%s2 + $0x38] sm:$0xf]
      %v435 = vld [vmem:[%s2 + $0x3c] sm:$0xf]
      %v436 = vld [vmem:[%s5 + $0x1] sm:$0x1]
      %v437 = vperm.slane %v436, 0
      %v454 = vunpack.c.l.b16 %v420
      %v455 = vunpack.c.l.b16 %v421
      %v456 = vunpack.c.l.b16 %v422
      %v457 = vunpack.c.l.b16 %v423
      %v458 = vunpack.c.l.b16 %v424
      %v459 = vunpack.c.l.b16 %v425
      %v460 = vunpack.c.l.b16 %v426
      %v461 = vunpack.c.l.b16 %v427
      %v462 = vunpack.c.l.b16 %v428
      %v463 = vunpack.c.l.b16 %v429
      %v464 = vunpack.c.l.b16 %v430
      %v465 = vunpack.c.l.b16 %v431
      %v466 = vunpack.c.l.b16 %v432
      %v467 = vunpack.c.l.b16 %v433
      %v468 = vunpack.c.l.b16 %v434
      %v469 = vunpack.c.l.b16 %v435
      %v470 = vpack.c.b16 %v455, %v454
      %v471 = vpack.c.b16 %v457, %v456
      %v472 = vpack.c.b16 %v459, %v458
      %v473 = vpack.c.b16 %v461, %v460
      %v474 = vpack.c.b16 %v463, %v462
      %v475 = vpack.c.b16 %v465, %v464
      %v476 = vpack.c.b16 %v467, %v466
      %v477 = vpack.c.b16 %v469, %v468
      %486 = vmatpush.bf16.msra.mxu0 %v477
      %487 = vmatpush.bf16.msra.mxu0 %v476
      %488 = vmatpush.bf16.msra.mxu0 %v475
      %489 = vmatpush.bf16.msra.mxu0 %v474
      %490 = vmatpush.bf16.msra.mxu0 %v473
      %491 = vmatpush.bf16.msra.mxu0 %v472
      %492 = vmatpush.bf16.msra.mxu0 %v471
      %493 = vmatpush.bf16.msra.mxu0 %v470
      %494 = vmatmul.bf16.gmra.mxu0 %v412
      %v495 = vpop.f32.mrf.mxu0
      %v496 = vadd.f32 %v437, %v495
      %v497 = vpop.f32.mrf.mxu0
      %v498 = vadd.f32 %v437, %v497
      %499 = vmatmul.bf16.gmra.mxu0 %v413
      %v500 = vpop.f32.mrf.mxu0
      %v501 = vadd.f32 %v437, %v500
      %v502 = vpop.f32.mrf.mxu0
      %v503 = vadd.f32 %v437, %v502
      %504 = vmatmul.bf16.gmra.mxu0 %v414
      %v505 = vpop.f32.mrf.mxu0
      %v506 = vadd.f32 %v437, %v505
      %v507 = vpop.f32.mrf.mxu0
      %v508 = vadd.f32 %v437, %v507
      %509 = vmatmul.bf16.gmra.mxu0 %v415
      %v510 = vpop.f32.mrf.mxu0
      %v511 = vadd.f32 %v437, %v510
      %v512 = vpop.f32.mrf.mxu0
      %v513 = vadd.f32 %v437, %v512
      %514 = vmatmul.bf16.gmra.mxu0 %v416
      %v515 = vpop.f32.mrf.mxu0
      %v516 = vadd.f32 %v437, %v515
      %v517 = vpop.f32.mrf.mxu0
      %v518 = vadd.f32 %v437, %v517
      %519 = vmatmul.bf16.gmra.mxu0 %v417
      %v520 = vpop.f32.mrf.mxu0
      %v521 = vadd.f32 %v437, %v520
      %v522 = vpop.f32.mrf.mxu0
      %v523 = vadd.f32 %v437, %v522
      %524 = vmatmul.bf16.gmra.mxu0 %v418
      %v525 = vpop.f32.mrf.mxu0
      %v526 = vadd.f32 %v437, %v525
      %v527 = vpop.f32.mrf.mxu0
      %v528 = vadd.f32 %v437, %v527
      %529 = vmatmul.bf16.gmra.mxu0 %v419
      %v530 = vpop.f32.mrf.mxu0
      %v531 = vadd.f32 %v437, %v530
      %v532 = vpop.f32.mrf.mxu0
      %v533 = vadd.f32 %v437, %v532
      %534 = vdwg.mxu0
      %v535 = vmax.f32 %v496, 0.0
      %v536 = vmax.f32 %v498, 0.0
      %v537 = vmax.f32 %v501, 0.0
      %v538 = vmax.f32 %v503, 0.0
      %v539 = vmax.f32 %v506, 0.0
      %v540 = vmax.f32 %v508, 0.0
      %v541 = vmax.f32 %v511, 0.0
      %v542 = vmax.f32 %v513, 0.0
      %v543 = vmax.f32 %v516, 0.0
      %v544 = vmax.f32 %v518, 0.0
      %v545 = vmax.f32 %v521, 0.0
      %v546 = vmax.f32 %v523, 0.0
      %v547 = vmax.f32 %v526, 0.0
      %v548 = vmax.f32 %v528, 0.0
      %v549 = vmax.f32 %v531, 0.0
      %v550 = vmax.f32 %v533, 0.0
      %v551 = vpack.c.bf16 %v536, %v535
      %v552 = vpack.c.bf16 %v538, %v537
      %v553 = vpack.c.bf16 %v540, %v539
      %v554 = vpack.c.bf16 %v542, %v541
      %v555 = vpack.c.bf16 %v544, %v543
      %v556 = vpack.c.bf16 %v546, %v545
      %v557 = vpack.c.bf16 %v548, %v547
      %v558 = vpack.c.bf16 %v550, %v549
      %v559 = vld [vmem:[%s3] sm:$0xf]
      %v560 = vld [vmem:[%s3 + $0x4] sm:$0xf]
      %v561 = vld [vmem:[%s3 + $0x8] sm:$0xf]
      %v562 = vld [vmem:[%s3 + $0xc] sm:$0xf]
      %v563 = vld [vmem:[%s3 + $0x10] sm:$0xf]
      %v564 = vld [vmem:[%s3 + $0x14] sm:$0xf]
      %v565 = vld [vmem:[%s3 + $0x18] sm:$0xf]
      %v566 = vld [vmem:[%s3 + $0x1c] sm:$0xf]
      %v567 = vld [vmem:[%s3 + $0x20] sm:$0xf]
      %v568 = vld [vmem:[%s3 + $0x24] sm:$0xf]
      %v569 = vld [vmem:[%s3 + $0x28] sm:$0xf]
      %v570 = vld [vmem:[%s3 + $0x2c] sm:$0xf]
      %v571 = vld [vmem:[%s3 + $0x30] sm:$0xf]
      %v572 = vld [vmem:[%s3 + $0x34] sm:$0xf]
      %v573 = vld [vmem:[%s3 + $0x38] sm:$0xf]
      %v574 = vld [vmem:[%s3 + $0x3c] sm:$0xf]
      %v575 = vld [vmem:[%s5 + $0x2] sm:$0x1]
      %v576 = vperm.slane %v575, 0
      %v593 = vunpack.c.l.b16 %v559
      %v594 = vunpack.c.l.b16 %v560
      %v595 = vunpack.c.l.b16 %v561
      %v596 = vunpack.c.l.b16 %v562
      %v597 = vunpack.c.l.b16 %v563
      %v598 = vunpack.c.l.b16 %v564
      %v599 = vunpack.c.l.b16 %v565
      %v600 = vunpack.c.l.b16 %v566
      %v601 = vunpack.c.l.b16 %v567
      %v602 = vunpack.c.l.b16 %v568
      %v603 = vunpack.c.l.b16 %v569
      %v604 = vunpack.c.l.b16 %v570
      %v605 = vunpack.c.l.b16 %v571
      %v606 = vunpack.c.l.b16 %v572
      %v607 = vunpack.c.l.b16 %v573
      %v608 = vunpack.c.l.b16 %v574
      %v609 = vpack.c.b16 %v594, %v593
      %v610 = vpack.c.b16 %v596, %v595
      %v611 = vpack.c.b16 %v598, %v597
      %v612 = vpack.c.b16 %v600, %v599
      %v613 = vpack.c.b16 %v602, %v601
      %v614 = vpack.c.b16 %v604, %v603
      %v615 = vpack.c.b16 %v606, %v605
      %v616 = vpack.c.b16 %v608, %v607
      %625 = vmatpush.bf16.msra.mxu0 %v616
      %626 = vmatpush.bf16.msra.mxu0 %v615
      %627 = vmatpush.bf16.msra.mxu0 %v614
      %628 = vmatpush.bf16.msra.mxu0 %v613
      %629 = vmatpush.bf16.msra.mxu0 %v612
      %630 = vmatpush.bf16.msra.mxu0 %v611
      %631 = vmatpush.bf16.msra.mxu0 %v610
      %632 = vmatpush.bf16.msra.mxu0 %v609
      %633 = vmatmul.bf16.gmra.mxu0 %v551
      %v634 = vpop.f32.mrf.mxu0
      %v635 = vadd.f32 %v576, %v634
      %v636 = vpop.f32.mrf.mxu0
      %v637 = vadd.f32 %v576, %v636
      %638 = vmatmul.bf16.gmra.mxu0 %v552
      %v639 = vpop.f32.mrf.mxu0
      %v640 = vadd.f32 %v576, %v639
      %v641 = vpop.f32.mrf.mxu0
      %v642 = vadd.f32 %v576, %v641
      %643 = vmatmul.bf16.gmra.mxu0 %v553
      %v644 = vpop.f32.mrf.mxu0
      %v645 = vadd.f32 %v576, %v644
      %v646 = vpop.f32.mrf.mxu0
      %v647 = vadd.f32 %v576, %v646
      %648 = vmatmul.bf16.gmra.mxu0 %v554
      %v649 = vpop.f32.mrf.mxu0
      %v650 = vadd.f32 %v576, %v649
      %v651 = vpop.f32.mrf.mxu0
      %v652 = vadd.f32 %v576, %v651
      %653 = vmatmul.bf16.gmra.mxu0 %v555
      %v654 = vpop.f32.mrf.mxu0
      %v655 = vadd.f32 %v576, %v654
      %v656 = vpop.f32.mrf.mxu0
      %v657 = vadd.f32 %v576, %v656
      %658 = vmatmul.bf16.gmra.mxu0 %v556
      %v659 = vpop.f32.mrf.mxu0
      %v660 = vadd.f32 %v576, %v659
      %v661 = vpop.f32.mrf.mxu0
      %v662 = vadd.f32 %v576, %v661
      %663 = vmatmul.bf16.gmra.mxu0 %v557
      %v664 = vpop.f32.mrf.mxu0
      %v665 = vadd.f32 %v576, %v664
      %v666 = vpop.f32.mrf.mxu0
      %v667 = vadd.f32 %v576, %v666
      %668 = vmatmul.bf16.gmra.mxu0 %v558
      %v669 = vpop.f32.mrf.mxu0
      %v670 = vadd.f32 %v576, %v669
      %v671 = vpop.f32.mrf.mxu0
      %v672 = vadd.f32 %v576, %v671
      %673 = vdwg.mxu0
      %v674 = vmax.f32 %v635, 0.0
      %v675 = vmax.f32 %v637, 0.0
      %v676 = vmax.f32 %v640, 0.0
      %v677 = vmax.f32 %v642, 0.0
      %v678 = vmax.f32 %v645, 0.0
      %v679 = vmax.f32 %v647, 0.0
      %v680 = vmax.f32 %v650, 0.0
      %v681 = vmax.f32 %v652, 0.0
      %v682 = vmax.f32 %v655, 0.0
      %v683 = vmax.f32 %v657, 0.0
      %v684 = vmax.f32 %v660, 0.0
      %v685 = vmax.f32 %v662, 0.0
      %v686 = vmax.f32 %v665, 0.0
      %v687 = vmax.f32 %v667, 0.0
      %v688 = vmax.f32 %v670, 0.0
      %v689 = vmax.f32 %v672, 0.0
      %v690 = vpack.c.bf16 %v675, %v674
      %v691 = vpack.c.bf16 %v677, %v676
      %v692 = vpack.c.bf16 %v679, %v678
      %v693 = vpack.c.bf16 %v681, %v680
      %v694 = vpack.c.bf16 %v683, %v682
      %v695 = vpack.c.bf16 %v685, %v684
      %v696 = vpack.c.bf16 %v687, %v686
      %v697 = vpack.c.bf16 %v689, %v688
      %v698 = vld [vmem:[%s4] sm:$0xf]
      %v699 = vld [vmem:[%s4 + $0x4] sm:$0xf]
      %v700 = vld [vmem:[%s4 + $0x8] sm:$0xf]
      %v701 = vld [vmem:[%s4 + $0xc] sm:$0xf]
      %v702 = vld [vmem:[%s4 + $0x10] sm:$0xf]
      %v703 = vld [vmem:[%s4 + $0x14] sm:$0xf]
      %v704 = vld [vmem:[%s4 + $0x18] sm:$0xf]
      %v705 = vld [vmem:[%s4 + $0x1c] sm:$0xf]
      %v706 = vld [vmem:[%s4 + $0x20] sm:$0xf]
      %v707 = vld [vmem:[%s4 + $0x24] sm:$0xf]
      %v708 = vld [vmem:[%s4 + $0x28] sm:$0xf]
      %v709 = vld [vmem:[%s4 + $0x2c] sm:$0xf]
      %v710 = vld [vmem:[%s4 + $0x30] sm:$0xf]
      %v711 = vld [vmem:[%s4 + $0x34] sm:$0xf]
      %v712 = vld [vmem:[%s4 + $0x38] sm:$0xf]
      %v713 = vld [vmem:[%s4 + $0x3c] sm:$0xf]
      %v714 = vld [vmem:[%s5 + $0x3] sm:$0x1]
      %v715 = vperm.slane %v714, 0
      %v732 = vunpack.c.l.b16 %v698
      %v733 = vunpack.c.l.b16 %v699
      %v734 = vunpack.c.l.b16 %v700
      %v735 = vunpack.c.l.b16 %v701
      %v736 = vunpack.c.l.b16 %v702
      %v737 = vunpack.c.l.b16 %v703
      %v738 = vunpack.c.l.b16 %v704
      %v739 = vunpack.c.l.b16 %v705
      %v740 = vunpack.c.l.b16 %v706
      %v741 = vunpack.c.l.b16 %v707
      %v742 = vunpack.c.l.b16 %v708
      %v743 = vunpack.c.l.b16 %v709
      %v744 = vunpack.c.l.b16 %v710
      %v745 = vunpack.c.l.b16 %v711
      %v746 = vunpack.c.l.b16 %v712
      %v747 = vunpack.c.l.b16 %v713
      %v748 = vpack.c.b16 %v733, %v732
      %v749 = vpack.c.b16 %v735, %v734
      %v750 = vpack.c.b16 %v737, %v736
      %v751 = vpack.c.b16 %v739, %v738
      %v752 = vpack.c.b16 %v741, %v740
      %v753 = vpack.c.b16 %v743, %v742
      %v754 = vpack.c.b16 %v745, %v744
      %v755 = vpack.c.b16 %v747, %v746
      %764 = vmatpush.bf16.msra.mxu0 %v755
      %765 = vmatpush.bf16.msra.mxu0 %v754
      %766 = vmatpush.bf16.msra.mxu0 %v753
      %767 = vmatpush.bf16.msra.mxu0 %v752
      %768 = vmatpush.bf16.msra.mxu0 %v751
      %769 = vmatpush.bf16.msra.mxu0 %v750
      %770 = vmatpush.bf16.msra.mxu0 %v749
      %771 = vmatpush.bf16.msra.mxu0 %v748
      %772 = vmatmul.bf16.gmra.mxu0 %v690
      %v773 = vpop.f32.mrf.mxu0
      %v774 = vadd.f32 %v715, %v773
      %v775 = vpop.f32.mrf.mxu0
      %v776 = vadd.f32 %v715, %v775
      %777 = vmatmul.bf16.gmra.mxu0 %v691
      %v778 = vpop.f32.mrf.mxu0
      %v779 = vadd.f32 %v715, %v778
      %v780 = vpop.f32.mrf.mxu0
      %v781 = vadd.f32 %v715, %v780
      %782 = vmatmul.bf16.gmra.mxu0 %v692
      %v783 = vpop.f32.mrf.mxu0
      %v784 = vadd.f32 %v715, %v783
      %v785 = vpop.f32.mrf.mxu0
      %v786 = vadd.f32 %v715, %v785
      %787 = vmatmul.bf16.gmra.mxu0 %v693
      %v788 = vpop.f32.mrf.mxu0
      %v789 = vadd.f32 %v715, %v788
      %v790 = vpop.f32.mrf.mxu0
      %v791 = vadd.f32 %v715, %v790
      %792 = vmatmul.bf16.gmra.mxu0 %v694
      %v793 = vpop.f32.mrf.mxu0
      %v794 = vadd.f32 %v715, %v793
      %v795 = vpop.f32.mrf.mxu0
      %v796 = vadd.f32 %v715, %v795
      %797 = vmatmul.bf16.gmra.mxu0 %v695
      %v798 = vpop.f32.mrf.mxu0
      %v799 = vadd.f32 %v715, %v798
      %v800 = vpop.f32.mrf.mxu0
      %v801 = vadd.f32 %v715, %v800
      %802 = vmatmul.bf16.gmra.mxu0 %v696
      %v803 = vpop.f32.mrf.mxu0
      %v804 = vadd.f32 %v715, %v803
      %v805 = vpop.f32.mrf.mxu0
      %v806 = vadd.f32 %v715, %v805
      %807 = vmatmul.bf16.gmra.mxu0 %v697
      %v808 = vpop.f32.mrf.mxu0
      %v809 = vadd.f32 %v715, %v808
      %v810 = vpop.f32.mrf.mxu0
      %v811 = vadd.f32 %v715, %v810
      %812 = vdwg.mxu0
      %v813 = vpack.c.bf16 %v774, %v774
      %v814 = vpack.c.bf16 %v776, %v776
      %v815 = vpack.c.bf16 %v779, %v779
      %v816 = vpack.c.bf16 %v781, %v781
      %v817 = vpack.c.bf16 %v784, %v784
      %v818 = vpack.c.bf16 %v786, %v786
      %v819 = vpack.c.bf16 %v789, %v789
      %v820 = vpack.c.bf16 %v791, %v791
      %v821 = vpack.c.bf16 %v794, %v794
      %v822 = vpack.c.bf16 %v796, %v796
      %v823 = vpack.c.bf16 %v799, %v799
      %v824 = vpack.c.bf16 %v801, %v801
      %v825 = vpack.c.bf16 %v804, %v804
      %v826 = vpack.c.bf16 %v806, %v806
      %v827 = vpack.c.bf16 %v809, %v809
      %v828 = vpack.c.bf16 %v811, %v811
      %829 = vst [vmem:[%s253] sm:$0xf] %v813
      %830 = vst [vmem:[%s253 + $0x4] sm:$0xf] %v814
      %831 = vst [vmem:[%s253 + $0x8] sm:$0xf] %v815
      %832 = vst [vmem:[%s253 + $0xc] sm:$0xf] %v816
      %833 = vst [vmem:[%s253 + $0x10] sm:$0xf] %v817
      %834 = vst [vmem:[%s253 + $0x14] sm:$0xf] %v818
      %835 = vst [vmem:[%s253 + $0x18] sm:$0xf] %v819
      %836 = vst [vmem:[%s253 + $0x1c] sm:$0xf] %v820
      %837 = vst [vmem:[%s253 + $0x20] sm:$0xf] %v821
      %838 = vst [vmem:[%s253 + $0x24] sm:$0xf] %v822
      %839 = vst [vmem:[%s253 + $0x28] sm:$0xf] %v823
      %840 = vst [vmem:[%s253 + $0x2c] sm:$0xf] %v824
      %841 = vst [vmem:[%s253 + $0x30] sm:$0xf] %v825
      %842 = vst [vmem:[%s253 + $0x34] sm:$0xf] %v826
      %843 = vst [vmem:[%s253 + $0x38] sm:$0xf] %v827
      %844 = vst [vmem:[%s253 + $0x3c] sm:$0xf] %v828
      %s845 = smul.u32 16, %s17
      %p846 = scmp.lt.s32.totalorder %s845, 31
      %s847 = scalar_select %p846, %s845, 31
      %s848 = smul.addr %s847, 4
      %s849 = scalar_lea.vmem %s6, %s848
      // Predicated region
      $region45: #{net_forward.1} parent=43 // pred_check
        %p850 = pneg %p166
      $region46: #{net_forward.1} parent=43 // pred_check_branch
        %852 = sbr.rel (%p850) target = $region48
      $region47: #{net_forward.1} parent=43 // pred_region
        %s853 = smul.u32 16, %s17
      $region48: #{net_forward.1} parent=43 // pred_fallthru
        _
    $region44: #{net_forward.1} parent=5 // pred_fallthru
      _
    %p854 = scmp.le.s32.totalorder 2, %s12
    // Predicated region
    $region49: #{net_forward.1} parent=5 // pred_check
      %p855 = pneg %p854
    $region50: #{net_forward.1} parent=5 // pred_check_branch
      %857 = sbr.rel (%p855) target = $region52
    $region51: #{net_forward.1} parent=5 // pred_region
      %s858 = ssub.s32 %s12, 2
      // Predicated region
      $region53: #{net_forward.1} parent=51 // pred_check
        %p859 = pneg %p172
      $region54: #{net_forward.1} parent=51 // pred_check_branch
        %861 = sbr.rel (%p859) target = $region56
      $region55: #{net_forward.1} parent=51 // pred_region
        %s862 = smul.u32 16, %s18
        %p863 = scmp.lt.s32.totalorder %s862, 31
        %s864 = scalar_select %p863, %s862, 31
        %s865 = smul.addr %s864, 4
        %s866 = scalar_lea.vmem %s6, %s865
      $region56: #{net_forward.1} parent=51 // pred_fallthru
        _
    $region52: #{net_forward.1} parent=5 // pred_fallthru
      _
  $region6: #{net_forward.1} parent=0 // loop_footer
    %s16 = sadd.s32 1, %s12
  $region7: #{net_forward.1} parent=0 // loop_footer_branch
    %11 = sbr.rel target = $region3
  $region8: #{net_forward.1} parent=0 // loop_exit
    _

</llo_original>
